<compile_context>
chip_gen: v6e
topology: v6e:2x2x1
jax: 0.10.0
libtpu: 0.0.40
codegen_flags: <defaults>
</compile_context>

<pallas_src>
import jax
import jax.numpy as jnp
from jax import lax
from jax.experimental import pallas as pl
from jax.experimental.pallas import tpu as pltpu


def _mask_kernel(d_ref, o_ref):
    d = d_ref[...]                                        # [tb, tn] demands
    # Global column index = node-tile offset + local lane index.
    col = lax.broadcasted_iota(jnp.int32, d.shape, dimension=1)
    col = col + pl.program_id(1) * d.shape[1]
    # Fused: demand fulfilled AND not the depot column.  Store bool directly.
    o_ref[...] = jnp.logical_and(d <= 0, col != 0)


def masking_layer(demands: jax.Array) -> jax.Array:
    """demands: [batch_size, num_nodes] float -> bool mask [batch_size, num_nodes]."""
    b, n = demands.shape
    if b == 0 or n == 0:  # mirrors the `if mask.size(1) > 0` guard
        return jnp.zeros((b, n), dtype=jnp.bool_)

    in_bytes = jnp.dtype(demands.dtype).itemsize         # typically 4 (f32)
    out_bytes = 1                                         # bool is i8-backed
    per_elem = 2 * (in_bytes + out_bytes)                 # double-buffered in+out

    # Per-grid-step VMEM budget (double-buffered input + output).
    budget = 12 * 1024 * 1024

    # --- node-axis tile ---------------------------------------------------
    # Use the full row (no 128-padding needed: full-extent last dims are
    # allowed) unless even a 32-row block of the full row would exceed the
    # budget, in which case tile nodes in multiples of 128.
    if per_elem * 32 * n <= budget:
        tn = n
    else:
        tn = (budget // (per_elem * 32) // 128) * 128
        tn = max(128, min(tn, ((n + 127) // 128) * 128))
    grid_n = pl.cdiv(n, tn)

    # --- batch-axis tile --------------------------------------------------
    tb_cap = max(32, (budget // (per_elem * tn) // 32) * 32)
    tb = min(4096, tb_cap)
    if tb >= b:
        tb = b                                            # single full-extent block
    grid_b = pl.cdiv(b, tb)

    return pl.pallas_call(
        _mask_kernel,
        out_shape=jax.ShapeDtypeStruct((b, n), jnp.bool_),
        grid=(grid_b, grid_n),
        in_specs=[pl.BlockSpec((tb, tn), lambda i, j: (i, j))],
        out_specs=pl.BlockSpec((tb, tn), lambda i, j: (i, j)),
        compiler_params=pltpu.CompilerParams(
            dimension_semantics=("parallel", "parallel"),
            vmem_limit_bytes=32 * 1024 * 1024),
    )(demands)


if __name__ == "__main__":
    key = jax.random.PRNGKey(0)
    batch, num_nodes = 2, 16
    # Mix of positive, zero and negative demands (deterministic).
    demands = jax.random.uniform(key, (batch, num_nodes), jnp.float32,
                                 minval=-0.5, maxval=1.0)
    demands = jnp.where(demands < 0.0, 0.0, demands)      # some exact zeros

    mask = jax.block_until_ready(masking_layer(demands))

    # Reference check in plain JAX (same semantics as the PyTorch module).
    ref = demands <= 0
    ref = ref.at[:, 0].set(False)
    assert mask.shape == (batch, num_nodes)
    assert mask.dtype == jnp.bool_
    assert bool(jnp.all(mask == ref))

    print("KERNEL_OK")
</pallas_src>

<mosaic_0001>
module attributes {stable_mosaic.version = 11 : i64} {
  func.func @_mask_kernel(%arg0: i32, %arg1: i32, %arg2: memref<2x16xf32, #tpu.memory_space<vmem>>, %arg3: memref<2x16xi32, #tpu.memory_space<vmem>>) attributes {dimension_semantics = [#tpu.dimension_semantics<parallel>, #tpu.dimension_semantics<parallel>], iteration_bounds = array<i64: 1, 1>, scalar_prefetch = 0 : i64, scratch_operands = 0 : i64, tpu.core_type = #tpu.core_type<tc>, window_params = [{transform_indices = @transform_0, window_bounds = array<i64: 2, 16>}, {transform_indices = @transform_1, window_bounds = array<i64: 2, 16>}]} {
    %c0 = arith.constant 0 : index
    %c0_0 = arith.constant 0 : index
    %0 = vector.load %arg2[%c0, %c0_0] : memref<2x16xf32, #tpu.memory_space<vmem>>, vector<2x16xf32>
    %1 = tpu.iota {dimensions = array<i32: 1>} : vector<2x16xi32>
    %c16_i32 = arith.constant 16 : i32
    %2 = arith.muli %arg1, %c16_i32 : i32
    %3 = vector.broadcast %2 : i32 to vector<2x16xi32>
    %4 = arith.addi %1, %3 : vector<2x16xi32>
    %cst = arith.constant 0.000000e+00 : f32
    %5 = vector.broadcast %cst : f32 to vector<2x16xf32>
    %6 = arith.cmpf ole, %0, %5 : vector<2x16xf32>
    %c0_i32 = arith.constant 0 : i32
    %7 = vector.broadcast %c0_i32 : i32 to vector<2x16xi32>
    %8 = arith.cmpi ne, %4, %7 : vector<2x16xi32>
    %9 = arith.andi %6, %8 : vector<2x16xi1>
    %c0_1 = arith.constant 0 : index
    %c0_2 = arith.constant 0 : index
    %10 = vector.load %arg3[%c0_1, %c0_2] : memref<2x16xi32, #tpu.memory_space<vmem>>, vector<2x16xi32>
    %11 = arith.extui %9 : vector<2x16xi1> to vector<2x16xi32>
    %cst_3 = arith.constant dense<0> : vector<2x16xi32>
    %12 = arith.cmpi ne, %10, %cst_3 : vector<2x16xi32>
    tpu.vector_store %arg3[%c0_1, %c0_2], %11 {strides = array<i32>} : memref<2x16xi32, #tpu.memory_space<vmem>>, vector<2x16xi32>,
    return
  }
  func.func @transform_0(%arg0: i32, %arg1: i32) -> (i32, i32) {
    %c0_i32 = arith.constant 0 : i32
    return %arg0, %arg1 : i32, i32
  }
  func.func @transform_1(%arg0: i32, %arg1: i32) -> (i32, i32) {
    %c0_i32 = arith.constant 0 : i32
    return %arg0, %arg1 : i32, i32
  }
}

</mosaic_0001>

<llo_original>
// kernel: tpu_custom_call.1
$region0: #{tpu_custom_call.1}
  #allocation0 [shape = 'u32[]', space=smem, size = 0x4, offset = 0x4, fixed_abs, tag = 'smem constant byte address 0x4 - core index']
  #allocation1 [shape = 'u32[144,128]{1,0:T(1,128)}', space=vmem, size = 0x12000, scoped, tag = 'internal scratch']
  %s0 = inlined_call_operand.hbm [shape: f32[2,16], index: 0, kind: input, shape index: {}]
  %s1 = inlined_call_operand.vmem [shape: s32[2,16], index: 1, kind: output, shape index: {}]
  %s2 = sld [smem:[#allocation0]]
  $region18: #{tpu_custom_call.1} parent=0
    _
  %s4 = ssub.s32 1, %s2
  %s5 = scalar_select 0, %s4, %s2
  $region1: #{tpu_custom_call.1} parent=0
    #allocation2 [shape = 'u8[1024]{0}', space=vmem, size = 0x400, scoped, tag = 'input window, operand 0, single buffered']
    #allocation3 [shape = 's32[1]{0}', space=sflag, size = 0x4, scoped, tag = 'scoped memory for tpu_custom_call.1']
    %6 = vsyncpa [#allocation3], 0
    // Predicated region
    $region2: #{tpu_custom_call.1} parent=1 // pred_check
      _
    $region3: #{tpu_custom_call.1} parent=1 // pred_check_branch
      %8 = sbr.rel (0) target = $region5
    $region4: #{tpu_custom_call.1} parent=1 // pred_region
      %s10 = ssub.s32 32, 32
      %11 = vsyncadd [#allocation3], %s10
      %s13 = sshll.u32 [#allocation2], 4
      %s14 = int_to_ptr.vmem [resolvable:$true] %s13
      %16 = dma.hbm_to_vmem [thread:$0]  %s0, 32, %s14, [#allocation3]
    $region5: #{tpu_custom_call.1} parent=1 // pred_fallthru
      _
    // Predicated region
    $region6: #{tpu_custom_call.1} parent=1 // pred_check
      _
    $region7: #{tpu_custom_call.1} parent=1 // pred_check_branch
      %18 = sbr.rel (0) target = $region9
    $region8: #{tpu_custom_call.1} parent=1 // pred_region
      %19 = dma.done [#allocation3], 32
    $region9: #{tpu_custom_call.1} parent=1 // pred_fallthru
      _
    %v20 = vld [vmem:[#allocation2] sm:$0x3]
    %v21 = vlaneseq
    %v22 = vand.u32 %v21, 127
    %s23 = smul.u32 0, 16
    %v24 = vstv %s23
    %v25 = vadd.s32 %v22, %v24
    %vm26 = vcmp.le.f32.partialorder %v20, 0.0
    %vm27 = vcmp.ne.s32.totalorder %v25, 0
    %vm28 = vmand %vm26, %vm27
    %v29 = vsel %vm28, 1, 0
    %vm30 = vcmask 123904
    %31 = vst.msk [vmem:[%s1] sm:$0x3] %vm30, %v29
    // Predicated region
    $region10: #{tpu_custom_call.1} parent=1 // pred_check
      _
    $region11: #{tpu_custom_call.1} parent=1 // pred_check_branch
      %33 = sbr.rel (0) target = $region13
    $region12: #{tpu_custom_call.1} parent=1 // pred_region
      _
    $region13: #{tpu_custom_call.1} parent=1 // pred_fallthru
      _
    // Predicated region
    $region14: #{tpu_custom_call.1} parent=1 // pred_check
      _
    $region15: #{tpu_custom_call.1} parent=1 // pred_check_branch
      %35 = sbr.rel (0) target = $region17
    $region16: #{tpu_custom_call.1} parent=1 // pred_region
      _
    $region17: #{tpu_custom_call.1} parent=1 // pred_fallthru
      _
    %36 = vsyncpa [#allocation3], 1

</llo_original>
